<compile_context>
chip_gen: v7x
topology: tpu7x:2x2x1
jax: 0.10.0
libtpu: 0.0.40
codegen_flags: <defaults>
</compile_context>

<pallas_src>
import functools

import jax
import jax.numpy as jnp
from jax.experimental import pallas as pl
from jax.experimental.pallas import tpu as pltpu

TOKEN_BLOCK = 512                    # max tokens per grid step (amortizes ~0.35us/step)
FAST_PATH_WEIGHT_BYTES = 8 << 20     # weight <= 8 MiB -> VMEM-resident one-hot MXU path
MAX_PREFETCH_IDS = 4096              # cap SMEM-resident ids per pallas_call (HBM path)
VMEM_BUDGET_BYTES = 24 << 20         # per-block VMEM budget for tb sizing (v7x-safe)
VMEM_LIMIT_BYTES = 32 << 20          # explicit scoped-VMEM limit


def _round_up(x, m):
    return ((x + m - 1) // m) * m


def _pick_token_block(n, per_token_vmem_bytes):
    tb = min(TOKEN_BLOCK,
             max(8, (VMEM_BUDGET_BYTES // max(per_token_vmem_bytes, 1)) // 8 * 8))
    tb = min(tb, _round_up(n, 8))
    return max(8, (tb // 8) * 8)


# ----------------------------------------------------------------------------- fast path
def _vpe_onehot_kernel(ids_ref, w_ref, o_ref, *, vocab_start, vocab_end):
    # ids_ref : VMEM int32 [tb, 1]
    # w_ref   : VMEM [V_local, D]   (resident: constant index_map)
    # o_ref   : VMEM [tb, D]
    tb = o_ref.shape[0]
    v_local = w_ref.shape[0]
    ids_blk = ids_ref[...]                                           # (tb, 1)
    in_range = jnp.logical_and(ids_blk >= vocab_start, ids_blk < vocab_end)
    lid = jnp.where(in_range, ids_blk - vocab_start, -1)             # -1 never matches iota
    col = jax.lax.broadcasted_iota(jnp.int32, (tb, v_local), 1)
    onehot = (col == lid).astype(w_ref.dtype)                        # zero row == range mask
    o_ref[...] = jnp.dot(onehot, w_ref[...],
                         preferred_element_type=jnp.float32).astype(o_ref.dtype)


def _onehot_call(ids_pad, weight, vocab_start, vocab_end, tb):
    n_pad = ids_pad.shape[0]
    v_local, d = weight.shape
    kernel = functools.partial(_vpe_onehot_kernel,
                               vocab_start=vocab_start, vocab_end=vocab_end)
    return pl.pallas_call(
        kernel,
        out_shape=jax.ShapeDtypeStruct((n_pad, d), weight.dtype),
        grid_spec=pltpu.PrefetchScalarGridSpec(
            num_scalar_prefetch=0,
            grid=(n_pad // tb,),
            in_specs=[pl.BlockSpec((tb, 1), lambda i: (i, 0)),
                      pl.BlockSpec((v_local, d), lambda i: (0, 0))],
            out_specs=pl.BlockSpec((tb, d), lambda i: (i, 0)),
        ),
        compiler_params=pltpu.CompilerParams(
            dimension_semantics=("arbitrary",),
            vmem_limit_bytes=VMEM_LIMIT_BYTES),
    )(ids_pad.reshape(n_pad, 1), weight)


# --------------------------------------------------------------------------- gather path
def _vpe_gather_kernel(ids_ref, w_hbm, o_ref, sem, *, vocab_start, vocab_end, token_block):
    # ids_ref : SMEM int32 [chunk]      (scalar-prefetched; pads are -1 -> out-of-range)
    # w_hbm   : HBM  [V_local, D]       (raw ref, memory_space=pl.ANY)
    # o_ref   : VMEM [token_block, D]   (pipelined output tile; row DMAs land here directly)
    # sem     : DMA semaphore shared by all row copies (all copies are (1, D))
    base = pl.program_id(0) * token_block

    # Dense memset of the whole tile: out-of-range / pad rows stay zero (this IS the mask).
    o_ref[...] = jnp.zeros_like(o_ref)

    # Phase 1: issue every in-range row DMA straight into o_ref (all concurrently in
    # flight), counting how many were started. unroll=8 keeps the scalar/misc slots fed.
    def _issue(j, count):
        gid = ids_ref[base + j]
        in_range = jnp.logical_and(gid >= vocab_start, gid < vocab_end)
        lid = jnp.where(in_range, gid - vocab_start, 0)

        @pl.when(in_range)
        def _():
            pltpu.make_async_copy(
                w_hbm.at[pl.ds(lid, 1), :],
                o_ref.at[pl.ds(j, 1), :],
                sem,
            ).start()

        return count + in_range.astype(jnp.int32)

    count = jax.lax.fori_loop(0, token_block, _issue, jnp.int32(0), unroll=8)

    # Phase 2: wait for exactly `count` copies with a dummy descriptor of identical (1, D)
    # shape (no SMEM re-reads / predicate re-evaluation).
    @pl.loop(0, count)
    def _wait(_):
        pltpu.make_async_copy(
            w_hbm.at[pl.ds(0, 1), :],
            o_ref.at[pl.ds(0, 1), :],
            sem,
        ).wait()


def _gather_call(ids_chunk, weight, vocab_start, vocab_end, tb):
    n_pad = ids_chunk.shape[0]
    v_local, d = weight.shape
    kernel = functools.partial(_vpe_gather_kernel,
                               vocab_start=vocab_start, vocab_end=vocab_end,
                               token_block=tb)
    return pl.pallas_call(
        kernel,
        out_shape=jax.ShapeDtypeStruct((n_pad, d), weight.dtype),
        grid_spec=pltpu.PrefetchScalarGridSpec(
            num_scalar_prefetch=1,
            grid=(n_pad // tb,),
            in_specs=[pl.BlockSpec(memory_space=pl.ANY)],        # weight stays in HBM
            out_specs=pl.BlockSpec((tb, d), lambda i, ids: (i, 0)),
            scratch_shapes=[pltpu.SemaphoreType.DMA],            # shared row-copy semaphore
        ),
        compiler_params=pltpu.CompilerParams(
            dimension_semantics=("parallel",),
            vmem_limit_bytes=VMEM_LIMIT_BYTES),
    )(ids_chunk, weight)


# ------------------------------------------------------------------------------- wrapper
def vocab_parallel_embedding(ids, weight, vocab_start, vocab_end, path=None):
    """Per-rank partial embedding lookup (pre all-reduce)."""
    orig_shape = ids.shape
    n = int(ids.size)
    v_local, d = weight.shape
    itemsize = jnp.dtype(weight.dtype).itemsize
    ids_flat = jnp.reshape(ids, (n,)).astype(jnp.int32)
    vocab_start, vocab_end = int(vocab_start), int(vocab_end)

    if path is None:
        path = "vmem" if v_local * d * itemsize <= FAST_PATH_WEIGHT_BYTES else "hbm"

    if path == "vmem":
        # per-token VMEM: double-buffered output row + f32 one-hot row
        tb = _pick_token_block(n, 2 * d * itemsize + v_local * 4)
        n_pad = _round_up(n, tb)
        ids_pad = jnp.pad(ids_flat, (0, n_pad - n), constant_values=-1)   # sentinel pad
        out = _onehot_call(ids_pad, weight, vocab_start, vocab_end, tb)
        return out[:n].reshape(*orig_shape, d)

    # "hbm" path: chunk so the scalar-prefetched id stream stays small in SMEM.
    tb = _pick_token_block(n, 2 * d * itemsize)
    chunk = max(tb, (MAX_PREFETCH_IDS // tb) * tb)
    n_pad = _round_up(n, tb)
    ids_pad = jnp.pad(ids_flat, (0, n_pad - n), constant_values=-1)        # sentinel pad
    pieces = [
        _gather_call(ids_pad[c0:c0 + chunk], weight, vocab_start, vocab_end, tb)
        for c0 in range(0, n_pad, chunk)
    ]
    out = pieces[0] if len(pieces) == 1 else jnp.concatenate(pieces, axis=0)
    return out[:n].reshape(*orig_shape, d)


if __name__ == "__main__":
    key = jax.random.PRNGKey(0)
    V, D = 512, 128          # num_embeddings, embedding_dim
    B, S = 2, 128            # batch, sequence
    tp_size = 2              # simulated tensor-model-parallel world size

    k_w, k_i = jax.random.split(key)
    # xavier_normal_ on the master weight [V, D]: std = sqrt(2 / (fan_in + fan_out))
    std = (2.0 / (V + D)) ** 0.5
    master_weight = jax.random.normal(k_w, (V, D), dtype=jnp.float32) * std
    ids = jax.random.randint(k_i, (B, S), 0, V, dtype=jnp.int32)

    per_partition = V // tp_size
    partials_vmem, partials_hbm = [], []
    for rank in range(tp_size):
        start = rank * per_partition
        end = start + per_partition
        w_local = master_weight[start:end]
        partials_vmem.append(vocab_parallel_embedding(ids, w_local, start, end, path="vmem"))
        partials_hbm.append(vocab_parallel_embedding(ids, w_local, start, end, path="hbm"))

    # TODO(synk): reduce_from_tensor_model_parallel_region is an all-reduce across the TP
    # group (jax.lax.psum / remote-DMA ring); on a single device we simulate it by summing
    # the per-rank partial outputs computed by the kernel.
    out_vmem = jax.block_until_ready(sum(partials_vmem))
    out_hbm = jax.block_until_ready(sum(partials_hbm))
    # TODO(synk): optional `self.norm` (LayerNorm when args.embed_layernorm) not included
    # (default config has it disabled).

    ref = master_weight[ids]
    assert out_vmem.shape == (B, S, D), out_vmem.shape
    assert out_hbm.shape == (B, S, D), out_hbm.shape
    # HBM row-DMA path is bit-exact (row copy + exact zeros from the other rank).
    assert jnp.allclose(out_hbm, ref, atol=1e-6), float(jnp.max(jnp.abs(out_hbm - ref)))
    # One-hot MXU path: allow small slack for MXU f32 pass decomposition.
    assert jnp.allclose(out_vmem, ref, atol=1e-3), float(jnp.max(jnp.abs(out_vmem - ref)))
    print("KERNEL_OK")
</pallas_src>

<mosaic_0001>
module attributes {stable_mosaic.version = 11 : i64} {
  func.func @_vpe_onehot_kernel(%arg0: i32, %arg1: memref<256x1xi32, #tpu.memory_space<vmem>>, %arg2: memref<256x128xf32, #tpu.memory_space<vmem>>, %arg3: memref<256x128xf32, #tpu.memory_space<vmem>>) attributes {dimension_semantics = [#tpu.dimension_semantics<arbitrary>], iteration_bounds = array<i64: 1>, scalar_prefetch = 0 : i64, scratch_operands = 0 : i64, tpu.core_type = #tpu.core_type<tc>, window_params = [{transform_indices = @transform_0, window_bounds = array<i64: 256, 1>}, {pipeline_mode = #tpu.pipeline_mode<synchronous>, transform_indices = @transform_1, window_bounds = array<i64: 256, 128>}, {transform_indices = @transform_2, window_bounds = array<i64: 256, 128>}]} {
    %c0 = arith.constant 0 : index
    %c0_0 = arith.constant 0 : index
    %0 = vector.load %arg1[%c0, %c0_0] : memref<256x1xi32, #tpu.memory_space<vmem>>, vector<256x1xi32>
    %c0_i32 = arith.constant 0 : i32
    %1 = vector.broadcast %c0_i32 : i32 to vector<256x1xi32>
    %2 = arith.cmpi sge, %0, %1 : vector<256x1xi32>
    %c256_i32 = arith.constant 256 : i32
    %3 = vector.broadcast %c256_i32 : i32 to vector<256x1xi32>
    %4 = arith.cmpi slt, %0, %3 : vector<256x1xi32>
    %5 = arith.andi %2, %4 : vector<256x1xi1>
    %c0_i32_1 = arith.constant 0 : i32
    %6 = vector.broadcast %c0_i32_1 : i32 to vector<256x1xi32>
    %7 = arith.subi %0, %6 : vector<256x1xi32>
    %c-1_i32 = arith.constant -1 : i32
    %8 = vector.broadcast %c-1_i32 : i32 to vector<256x1xi32>
    %9 = arith.select %5, %7, %8 : vector<256x1xi1>, vector<256x1xi32>
    %10 = tpu.iota {dimensions = array<i32: 1>} : vector<256x256xi32>
    %11 = vector.broadcast %9 : vector<256x1xi32> to vector<256x256xi32>
    %12 = arith.cmpi eq, %10, %11 : vector<256x256xi32>
    %13 = arith.extui %12 : vector<256x256xi1> to vector<256x256xi32>
    %14 = arith.sitofp %13 : vector<256x256xi32> to vector<256x256xf32>
    %c0_2 = arith.constant 0 : index
    %c0_3 = arith.constant 0 : index
    %15 = vector.load %arg2[%c0_2, %c0_3] : memref<256x128xf32, #tpu.memory_space<vmem>>, vector<256x128xf32>
    %cst = arith.constant dense<0.000000e+00> : vector<256x128xf32>
    %16 = tpu.matmul %14, %15, %cst {dimension_numbers = #tpu.dot_dimension_numbers<[1], [0], [0], [1], [0, 0, 1, 1], [], []>} : vector<256x256xf32>, vector<256x128xf32>, vector<256x128xf32> -> vector<256x128xf32>
    %c0_4 = arith.constant 0 : index
    %c0_5 = arith.constant 0 : index
    %17 = vector.load %arg3[%c0_4, %c0_5] : memref<256x128xf32, #tpu.memory_space<vmem>>, vector<256x128xf32>
    tpu.vector_store %arg3[%c0_4, %c0_5], %16 {strides = array<i32>} : memref<256x128xf32, #tpu.memory_space<vmem>>, vector<256x128xf32>,
    return
  }
  func.func @transform_0(%arg0: i32) -> (i32, i32) {
    %c0_i32 = arith.constant 0 : i32
    %c0_i32_0 = arith.constant 0 : i32
    return %arg0, %c0_i32 : i32, i32
  }
  func.func @transform_1(%arg0: i32) -> (i32, i32) {
    %c0_i32 = arith.constant 0 : i32
    %c0_i32_0 = arith.constant 0 : i32
    %c0_i32_1 = arith.constant 0 : i32
    return %c0_i32, %c0_i32_0 : i32, i32
  }
  func.func @transform_2(%arg0: i32) -> (i32, i32) {
    %c0_i32 = arith.constant 0 : i32
    %c0_i32_0 = arith.constant 0 : i32
    return %arg0, %c0_i32 : i32, i32
  }
}

</mosaic_0001>

<llo_original>
// kernel: tpu_custom_call.1
$region0: #{tpu_custom_call.1}
  #allocation0 [shape = 'u32[]', space=smem, size = 0x4, offset = 0x4, fixed_abs, tag = 'smem constant byte address 0x4 - core index']
  #allocation1 [shape = 'u32[144,128]{1,0:T(1,128)}', space=vmem, size = 0x12000, scoped, tag = 'internal scratch']
  %s0 = inlined_call_operand.vmem [shape: s32[256,1], index: 0, kind: input, shape index: {}]
  %s1 = inlined_call_operand.vmem [shape: f32[256,128], index: 1, kind: input, shape index: {}]
  %s2 = inlined_call_operand.hbm [shape: f32[256,128], index: 2, kind: output, shape index: {}]
  %s3 = sld [smem:[#allocation0]]
  $region18: #{tpu_custom_call.1} parent=0
    _
  %s5 = ssub.s32 1, %s3
  %s6 = scalar_select 0, %s5, %s3
  $region1: #{tpu_custom_call.1} parent=0
    #allocation2 [shape = 'u8[131072]{0}', space=vmem, size = 0x20000, scoped, tag = 'output window, operand 0, single buffered']
    #allocation3 [shape = 's32[1]{0}', space=sflag, size = 0x4, scoped, tag = 'scoped memory for tpu_custom_call.1']
    %7 = vsyncpa [#allocation3], 0
    // Predicated region
    $region2: #{tpu_custom_call.1} parent=1 // pred_check
      _
    $region3: #{tpu_custom_call.1} parent=1 // pred_check_branch
      %9 = sbr.rel (0) target = $region5
    $region4: #{tpu_custom_call.1} parent=1 // pred_region
      _
    $region5: #{tpu_custom_call.1} parent=1 // pred_fallthru
      _
    // Predicated region
    $region6: #{tpu_custom_call.1} parent=1 // pred_check
      _
    $region7: #{tpu_custom_call.1} parent=1 // pred_check_branch
      %11 = sbr.rel (0) target = $region9
    $region8: #{tpu_custom_call.1} parent=1 // pred_region
      _
    $region9: #{tpu_custom_call.1} parent=1 // pred_fallthru
      _
    %v12 = vld [vmem:[%s0] sm:$0xff]
    %v13 = vld [vmem:[%s0 + $0x8] sm:$0xff]
    %v14 = vld [vmem:[%s0 + $0x10] sm:$0xff]
    %v15 = vld [vmem:[%s0 + $0x18] sm:$0xff]
    %v16 = vld [vmem:[%s0 + $0x20] sm:$0xff]
    %v17 = vld [vmem:[%s0 + $0x28] sm:$0xff]
    %v18 = vld [vmem:[%s0 + $0x30] sm:$0xff]
    %v19 = vld [vmem:[%s0 + $0x38] sm:$0xff]
    %v20 = vld [vmem:[%s0 + $0x40] sm:$0xff]
    %v21 = vld [vmem:[%s0 + $0x48] sm:$0xff]
    %v22 = vld [vmem:[%s0 + $0x50] sm:$0xff]
    %v23 = vld [vmem:[%s0 + $0x58] sm:$0xff]
    %v24 = vld [vmem:[%s0 + $0x60] sm:$0xff]
    %v25 = vld [vmem:[%s0 + $0x68] sm:$0xff]
    %v26 = vld [vmem:[%s0 + $0x70] sm:$0xff]
    %v27 = vld [vmem:[%s0 + $0x78] sm:$0xff]
    %v28 = vld [vmem:[%s0 + $0x80] sm:$0xff]
    %v29 = vld [vmem:[%s0 + $0x88] sm:$0xff]
    %v30 = vld [vmem:[%s0 + $0x90] sm:$0xff]
    %v31 = vld [vmem:[%s0 + $0x98] sm:$0xff]
    %v32 = vld [vmem:[%s0 + $0xa0] sm:$0xff]
    %v33 = vld [vmem:[%s0 + $0xa8] sm:$0xff]
    %v34 = vld [vmem:[%s0 + $0xb0] sm:$0xff]
    %v35 = vld [vmem:[%s0 + $0xb8] sm:$0xff]
    %v36 = vld [vmem:[%s0 + $0xc0] sm:$0xff]
    %v37 = vld [vmem:[%s0 + $0xc8] sm:$0xff]
    %v38 = vld [vmem:[%s0 + $0xd0] sm:$0xff]
    %v39 = vld [vmem:[%s0 + $0xd8] sm:$0xff]
    %v40 = vld [vmem:[%s0 + $0xe0] sm:$0xff]
    %v41 = vld [vmem:[%s0 + $0xe8] sm:$0xff]
    %v42 = vld [vmem:[%s0 + $0xf0] sm:$0xff]
    %v43 = vld [vmem:[%s0 + $0xf8] sm:$0xff]
    %vm44 = vcmp.ge.s32.totalorder %v12, 0
    %vm45 = vcmp.ge.s32.totalorder %v13, 0
    %vm46 = vcmp.ge.s32.totalorder %v14, 0
    %vm47 = vcmp.ge.s32.totalorder %v15, 0
    %vm48 = vcmp.ge.s32.totalorder %v16, 0
    %vm49 = vcmp.ge.s32.totalorder %v17, 0
    %vm50 = vcmp.ge.s32.totalorder %v18, 0
    %vm51 = vcmp.ge.s32.totalorder %v19, 0
    %vm52 = vcmp.ge.s32.totalorder %v20, 0
    %vm53 = vcmp.ge.s32.totalorder %v21, 0
    %vm54 = vcmp.ge.s32.totalorder %v22, 0
    %vm55 = vcmp.ge.s32.totalorder %v23, 0
    %vm56 = vcmp.ge.s32.totalorder %v24, 0
    %vm57 = vcmp.ge.s32.totalorder %v25, 0
    %vm58 = vcmp.ge.s32.totalorder %v26, 0
    %vm59 = vcmp.ge.s32.totalorder %v27, 0
    %vm60 = vcmp.ge.s32.totalorder %v28, 0
    %vm61 = vcmp.ge.s32.totalorder %v29, 0
    %vm62 = vcmp.ge.s32.totalorder %v30, 0
    %vm63 = vcmp.ge.s32.totalorder %v31, 0
    %vm64 = vcmp.ge.s32.totalorder %v32, 0
    %vm65 = vcmp.ge.s32.totalorder %v33, 0
    %vm66 = vcmp.ge.s32.totalorder %v34, 0
    %vm67 = vcmp.ge.s32.totalorder %v35, 0
    %vm68 = vcmp.ge.s32.totalorder %v36, 0
    %vm69 = vcmp.ge.s32.totalorder %v37, 0
    %vm70 = vcmp.ge.s32.totalorder %v38, 0
    %vm71 = vcmp.ge.s32.totalorder %v39, 0
    %vm72 = vcmp.ge.s32.totalorder %v40, 0
    %vm73 = vcmp.ge.s32.totalorder %v41, 0
    %vm74 = vcmp.ge.s32.totalorder %v42, 0
    %vm75 = vcmp.ge.s32.totalorder %v43, 0
    %vm76 = vcmp.lt.s32.totalorder %v12, 256
    %vm77 = vcmp.lt.s32.totalorder %v13, 256
    %vm78 = vcmp.lt.s32.totalorder %v14, 256
    %vm79 = vcmp.lt.s32.totalorder %v15, 256
    %vm80 = vcmp.lt.s32.totalorder %v16, 256
    %vm81 = vcmp.lt.s32.totalorder %v17, 256
    %vm82 = vcmp.lt.s32.totalorder %v18, 256
    %vm83 = vcmp.lt.s32.totalorder %v19, 256
    %vm84 = vcmp.lt.s32.totalorder %v20, 256
    %vm85 = vcmp.lt.s32.totalorder %v21, 256
    %vm86 = vcmp.lt.s32.totalorder %v22, 256
    %vm87 = vcmp.lt.s32.totalorder %v23, 256
    %vm88 = vcmp.lt.s32.totalorder %v24, 256
    %vm89 = vcmp.lt.s32.totalorder %v25, 256
    %vm90 = vcmp.lt.s32.totalorder %v26, 256
    %vm91 = vcmp.lt.s32.totalorder %v27, 256
    %vm92 = vcmp.lt.s32.totalorder %v28, 256
    %vm93 = vcmp.lt.s32.totalorder %v29, 256
    %vm94 = vcmp.lt.s32.totalorder %v30, 256
    %vm95 = vcmp.lt.s32.totalorder %v31, 256
    %vm96 = vcmp.lt.s32.totalorder %v32, 256
    %vm97 = vcmp.lt.s32.totalorder %v33, 256
    %vm98 = vcmp.lt.s32.totalorder %v34, 256
    %vm99 = vcmp.lt.s32.totalorder %v35, 256
    %vm100 = vcmp.lt.s32.totalorder %v36, 256
    %vm101 = vcmp.lt.s32.totalorder %v37, 256
    %vm102 = vcmp.lt.s32.totalorder %v38, 256
    %vm103 = vcmp.lt.s32.totalorder %v39, 256
    %vm104 = vcmp.lt.s32.totalorder %v40, 256
    %vm105 = vcmp.lt.s32.totalorder %v41, 256
    %vm106 = vcmp.lt.s32.totalorder %v42, 256
    %vm107 = vcmp.lt.s32.totalorder %v43, 256
    %vm108 = vmand %vm44, %vm76
    %vm109 = vmand %vm45, %vm77
    %vm110 = vmand %vm46, %vm78
    %vm111 = vmand %vm47, %vm79
    %vm112 = vmand %vm48, %vm80
    %vm113 = vmand %vm49, %vm81
    %vm114 = vmand %vm50, %vm82
    %vm115 = vmand %vm51, %vm83
    %vm116 = vmand %vm52, %vm84
    %vm117 = vmand %vm53, %vm85
    %vm118 = vmand %vm54, %vm86
    %vm119 = vmand %vm55, %vm87
    %vm120 = vmand %vm56, %vm88
    %vm121 = vmand %vm57, %vm89
    %vm122 = vmand %vm58, %vm90
    %vm123 = vmand %vm59, %vm91
    %vm124 = vmand %vm60, %vm92
    %vm125 = vmand %vm61, %vm93
    %vm126 = vmand %vm62, %vm94
    %vm127 = vmand %vm63, %vm95
    %vm128 = vmand %vm64, %vm96
    %vm129 = vmand %vm65, %vm97
    %vm130 = vmand %vm66, %vm98
    %vm131 = vmand %vm67, %vm99
    %vm132 = vmand %vm68, %vm100
    %vm133 = vmand %vm69, %vm101
    %vm134 = vmand %vm70, %vm102
    %vm135 = vmand %vm71, %vm103
    %vm136 = vmand %vm72, %vm104
    %vm137 = vmand %vm73, %vm105
    %vm138 = vmand %vm74, %vm106
    %vm139 = vmand %vm75, %vm107
    %v140 = vsel %vm108, %v12, 4294967295
    %v141 = vsel %vm109, %v13, 4294967295
    %v142 = vsel %vm110, %v14, 4294967295
    %v143 = vsel %vm111, %v15, 4294967295
    %v144 = vsel %vm112, %v16, 4294967295
    %v145 = vsel %vm113, %v17, 4294967295
    %v146 = vsel %vm114, %v18, 4294967295
    %v147 = vsel %vm115, %v19, 4294967295
    %v148 = vsel %vm116, %v20, 4294967295
    %v149 = vsel %vm117, %v21, 4294967295
    %v150 = vsel %vm118, %v22, 4294967295
    %v151 = vsel %vm119, %v23, 4294967295
    %v152 = vsel %vm120, %v24, 4294967295
    %v153 = vsel %vm121, %v25, 4294967295
    %v154 = vsel %vm122, %v26, 4294967295
    %v155 = vsel %vm123, %v27, 4294967295
    %v156 = vsel %vm124, %v28, 4294967295
    %v157 = vsel %vm125, %v29, 4294967295
    %v158 = vsel %vm126, %v30, 4294967295
    %v159 = vsel %vm127, %v31, 4294967295
    %v160 = vsel %vm128, %v32, 4294967295
    %v161 = vsel %vm129, %v33, 4294967295
    %v162 = vsel %vm130, %v34, 4294967295
    %v163 = vsel %vm131, %v35, 4294967295
    %v164 = vsel %vm132, %v36, 4294967295
    %v165 = vsel %vm133, %v37, 4294967295
    %v166 = vsel %vm134, %v38, 4294967295
    %v167 = vsel %vm135, %v39, 4294967295
    %v168 = vsel %vm136, %v40, 4294967295
    %v169 = vsel %vm137, %v41, 4294967295
    %v170 = vsel %vm138, %v42, 4294967295
    %v171 = vsel %vm139, %v43, 4294967295
    %v172 = vlaneseq
    %v173 = vand.u32 %v172, 127
    %v174 = vadd.s32 %v173, 128
    %175 = vset.pattern.permute.xlu0 0
    %176 = vperm.xlu0 %175, %v140
    %v177 = vpop.permute.xlu0 %176
    %178 = vset.pattern.permute.xlu0 0
    %179 = vperm.xlu0 %178, %v141
    %v180 = vpop.permute.xlu0 %179
    %181 = vset.pattern.permute.xlu0 0
    %182 = vperm.xlu0 %181, %v142
    %v183 = vpop.permute.xlu0 %182
    %184 = vset.pattern.permute.xlu0 0
    %185 = vperm.xlu0 %184, %v143
    %v186 = vpop.permute.xlu0 %185
    %187 = vset.pattern.permute.xlu0 0
    %188 = vperm.xlu0 %187, %v144
    %v189 = vpop.permute.xlu0 %188
    %190 = vset.pattern.permute.xlu0 0
    %191 = vperm.xlu0 %190, %v145
    %v192 = vpop.permute.xlu0 %191
    %193 = vset.pattern.permute.xlu0 0
    %194 = vperm.xlu0 %193, %v146
    %v195 = vpop.permute.xlu0 %194
    %196 = vset.pattern.permute.xlu0 0
    %197 = vperm.xlu0 %196, %v147
    %v198 = vpop.permute.xlu0 %197
    %199 = vset.pattern.permute.xlu0 0
    %200 = vperm.xlu0 %199, %v148
    %v201 = vpop.permute.xlu0 %200
    %202 = vset.pattern.permute.xlu0 0
    %203 = vperm.xlu0 %202, %v149
    %v204 = vpop.permute.xlu0 %203
    %205 = vset.pattern.permute.xlu0 0
    %206 = vperm.xlu0 %205, %v150
    %v207 = vpop.permute.xlu0 %206
    %208 = vset.pattern.permute.xlu0 0
    %209 = vperm.xlu0 %208, %v151
    %v210 = vpop.permute.xlu0 %209
    %211 = vset.pattern.permute.xlu0 0
    %212 = vperm.xlu0 %211, %v152
    %v213 = vpop.permute.xlu0 %212
    %214 = vset.pattern.permute.xlu0 0
    %215 = vperm.xlu0 %214, %v153
    %v216 = vpop.permute.xlu0 %215
    %217 = vset.pattern.permute.xlu0 0
    %218 = vperm.xlu0 %217, %v154
    %v219 = vpop.permute.xlu0 %218
    %220 = vset.pattern.permute.xlu0 0
    %221 = vperm.xlu0 %220, %v155
    %v222 = vpop.permute.xlu0 %221
    %223 = vset.pattern.permute.xlu0 0
    %224 = vperm.xlu0 %223, %v156
    %v225 = vpop.permute.xlu0 %224
    %226 = vset.pattern.permute.xlu0 0
    %227 = vperm.xlu0 %226, %v157
    %v228 = vpop.permute.xlu0 %227
    %229 = vset.pattern.permute.xlu0 0
    %230 = vperm.xlu0 %229, %v158
    %v231 = vpop.permute.xlu0 %230
    %232 = vset.pattern.permute.xlu0 0
    %233 = vperm.xlu0 %232, %v159
    %v234 = vpop.permute.xlu0 %233
    %235 = vset.pattern.permute.xlu0 0
    %236 = vperm.xlu0 %235, %v160
    %v237 = vpop.permute.xlu0 %236
    %238 = vset.pattern.permute.xlu0 0
    %239 = vperm.xlu0 %238, %v161
    %v240 = vpop.permute.xlu0 %239
    %241 = vset.pattern.permute.xlu0 0
    %242 = vperm.xlu0 %241, %v162
    %v243 = vpop.permute.xlu0 %242
    %244 = vset.pattern.permute.xlu0 0
    %245 = vperm.xlu0 %244, %v163
    %v246 = vpop.permute.xlu0 %245
    %247 = vset.pattern.permute.xlu0 0
    %248 = vperm.xlu0 %247, %v164
    %v249 = vpop.permute.xlu0 %248
    %250 = vset.pattern.permute.xlu0 0
    %251 = vperm.xlu0 %250, %v165
    %v252 = vpop.permute.xlu0 %251
    %253 = vset.pattern.permute.xlu0 0
    %254 = vperm.xlu0 %253, %v166
    %v255 = vpop.permute.xlu0 %254
    %256 = vset.pattern.permute.xlu0 0
    %257 = vperm.xlu0 %256, %v167
    %v258 = vpop.permute.xlu0 %257
    %259 = vset.pattern.permute.xlu0 0
    %260 = vperm.xlu0 %259, %v168
    %v261 = vpop.permute.xlu0 %260
    %262 = vset.pattern.permute.xlu0 0
    %263 = vperm.xlu0 %262, %v169
    %v264 = vpop.permute.xlu0 %263
    %265 = vset.pattern.permute.xlu0 0
    %266 = vperm.xlu0 %265, %v170
    %v267 = vpop.permute.xlu0 %266
    %268 = vset.pattern.permute.xlu0 0
    %269 = vperm.xlu0 %268, %v171
    %v270 = vpop.permute.xlu0 %269
    %vm271 = vcmp.eq.s32.totalorder %v173, %v177
    %vm272 = vcmp.eq.s32.totalorder %v174, %v177
    %vm273 = vcmp.eq.s32.totalorder %v173, %v180
    %vm274 = vcmp.eq.s32.totalorder %v174, %v180
    %vm275 = vcmp.eq.s32.totalorder %v173, %v183
    %vm276 = vcmp.eq.s32.totalorder %v174, %v183
    %vm277 = vcmp.eq.s32.totalorder %v173, %v186
    %vm278 = vcmp.eq.s32.totalorder %v174, %v186
    %vm279 = vcmp.eq.s32.totalorder %v173, %v189
    %vm280 = vcmp.eq.s32.totalorder %v174, %v189
    %vm281 = vcmp.eq.s32.totalorder %v173, %v192
    %vm282 = vcmp.eq.s32.totalorder %v174, %v192
    %vm283 = vcmp.eq.s32.totalorder %v173, %v195
    %vm284 = vcmp.eq.s32.totalorder %v174, %v195
    %vm285 = vcmp.eq.s32.totalorder %v173, %v198
    %vm286 = vcmp.eq.s32.totalorder %v174, %v198
    %vm287 = vcmp.eq.s32.totalorder %v173, %v201
    %vm288 = vcmp.eq.s32.totalorder %v174, %v201
    %vm289 = vcmp.eq.s32.totalorder %v173, %v204
    %vm290 = vcmp.eq.s32.totalorder %v174, %v204
    %vm291 = vcmp.eq.s32.totalorder %v173, %v207
    %vm292 = vcmp.eq.s32.totalorder %v174, %v207
    %vm293 = vcmp.eq.s32.totalorder %v173, %v210
    %vm294 = vcmp.eq.s32.totalorder %v174, %v210
    %vm295 = vcmp.eq.s32.totalorder %v173, %v213
    %vm296 = vcmp.eq.s32.totalorder %v174, %v213
    %vm297 = vcmp.eq.s32.totalorder %v173, %v216
    %vm298 = vcmp.eq.s32.totalorder %v174, %v216
    %vm299 = vcmp.eq.s32.totalorder %v173, %v219
    %vm300 = vcmp.eq.s32.totalorder %v174, %v219
    %vm301 = vcmp.eq.s32.totalorder %v173, %v222
    %vm302 = vcmp.eq.s32.totalorder %v174, %v222
    %vm303 = vcmp.eq.s32.totalorder %v173, %v225
    %vm304 = vcmp.eq.s32.totalorder %v174, %v225
    %vm305 = vcmp.eq.s32.totalorder %v173, %v228
    %vm306 = vcmp.eq.s32.totalorder %v174, %v228
    %vm307 = vcmp.eq.s32.totalorder %v173, %v231
    %vm308 = vcmp.eq.s32.totalorder %v174, %v231
    %vm309 = vcmp.eq.s32.totalorder %v173, %v234
    %vm310 = vcmp.eq.s32.totalorder %v174, %v234
    %vm311 = vcmp.eq.s32.totalorder %v173, %v237
    %vm312 = vcmp.eq.s32.totalorder %v174, %v237
    %vm313 = vcmp.eq.s32.totalorder %v173, %v240
    %vm314 = vcmp.eq.s32.totalorder %v174, %v240
    %vm315 = vcmp.eq.s32.totalorder %v173, %v243
    %vm316 = vcmp.eq.s32.totalorder %v174, %v243
    %vm317 = vcmp.eq.s32.totalorder %v173, %v246
    %vm318 = vcmp.eq.s32.totalorder %v174, %v246
    %vm319 = vcmp.eq.s32.totalorder %v173, %v249
    %vm320 = vcmp.eq.s32.totalorder %v174, %v249
    %vm321 = vcmp.eq.s32.totalorder %v173, %v252
    %vm322 = vcmp.eq.s32.totalorder %v174, %v252
    %vm323 = vcmp.eq.s32.totalorder %v173, %v255
    %vm324 = vcmp.eq.s32.totalorder %v174, %v255
    %vm325 = vcmp.eq.s32.totalorder %v173, %v258
    %vm326 = vcmp.eq.s32.totalorder %v174, %v258
    %vm327 = vcmp.eq.s32.totalorder %v173, %v261
    %vm328 = vcmp.eq.s32.totalorder %v174, %v261
    %vm329 = vcmp.eq.s32.totalorder %v173, %v264
    %vm330 = vcmp.eq.s32.totalorder %v174, %v264
    %vm331 = vcmp.eq.s32.totalorder %v173, %v267
    %vm332 = vcmp.eq.s32.totalorder %v174, %v267
    %vm333 = vcmp.eq.s32.totalorder %v173, %v270
    %vm334 = vcmp.eq.s32.totalorder %v174, %v270
    %v335 = vsel %vm271, 1, 0
    %v336 = vsel %vm272, 1, 0
    %v337 = vsel %vm273, 1, 0
    %v338 = vsel %vm274, 1, 0
    %v339 = vsel %vm275, 1, 0
    %v340 = vsel %vm276, 1, 0
    %v341 = vsel %vm277, 1, 0
    %v342 = vsel %vm278, 1, 0
    %v343 = vsel %vm279, 1, 0
    %v344 = vsel %vm280, 1, 0
    %v345 = vsel %vm281, 1, 0
    %v346 = vsel %vm282, 1, 0
    %v347 = vsel %vm283, 1, 0
    %v348 = vsel %vm284, 1, 0
    %v349 = vsel %vm285, 1, 0
    %v350 = vsel %vm286, 1, 0
    %v351 = vsel %vm287, 1, 0
    %v352 = vsel %vm288, 1, 0
    %v353 = vsel %vm289, 1, 0
    %v354 = vsel %vm290, 1, 0
    %v355 = vsel %vm291, 1, 0
    %v356 = vsel %vm292, 1, 0
    %v357 = vsel %vm293, 1, 0
    %v358 = vsel %vm294, 1, 0
    %v359 = vsel %vm295, 1, 0
    %v360 = vsel %vm296, 1, 0
    %v361 = vsel %vm297, 1, 0
    %v362 = vsel %vm298, 1, 0
    %v363 = vsel %vm299, 1, 0
    %v364 = vsel %vm300, 1, 0
    %v365 = vsel %vm301, 1, 0
    %v366 = vsel %vm302, 1, 0
    %v367 = vsel %vm303, 1, 0
    %v368 = vsel %vm304, 1, 0
    %v369 = vsel %vm305, 1, 0
    %v370 = vsel %vm306, 1, 0
    %v371 = vsel %vm307, 1, 0
    %v372 = vsel %vm308, 1, 0
    %v373 = vsel %vm309, 1, 0
    %v374 = vsel %vm310, 1, 0
    %v375 = vsel %vm311, 1, 0
    %v376 = vsel %vm312, 1, 0
    %v377 = vsel %vm313, 1, 0
    %v378 = vsel %vm314, 1, 0
    %v379 = vsel %vm315, 1, 0
    %v380 = vsel %vm316, 1, 0
    %v381 = vsel %vm317, 1, 0
    %v382 = vsel %vm318, 1, 0
    %v383 = vsel %vm319, 1, 0
    %v384 = vsel %vm320, 1, 0
    %v385 = vsel %vm321, 1, 0
    %v386 = vsel %vm322, 1, 0
    %v387 = vsel %vm323, 1, 0
    %v388 = vsel %vm324, 1, 0
    %v389 = vsel %vm325, 1, 0
    %v390 = vsel %vm326, 1, 0
    %v391 = vsel %vm327, 1, 0
    %v392 = vsel %vm328, 1, 0
    %v393 = vsel %vm329, 1, 0
    %v394 = vsel %vm330, 1, 0
    %v395 = vsel %vm331, 1, 0
    %v396 = vsel %vm332, 1, 0
    %v397 = vsel %vm333, 1, 0
    %v398 = vsel %vm334, 1, 0
    %v399 = vcvt.s32.f32 %v335
    %v400 = vcvt.s32.f32 %v336
    %v401 = vcvt.s32.f32 %v337
    %v402 = vcvt.s32.f32 %v338
    %v403 = vcvt.s32.f32 %v339
    %v404 = vcvt.s32.f32 %v340
    %v405 = vcvt.s32.f32 %v341
    %v406 = vcvt.s32.f32 %v342
    %v407 = vcvt.s32.f32 %v343
    %v408 = vcvt.s32.f32 %v344
    %v409 = vcvt.s32.f32 %v345
    %v410 = vcvt.s32.f32 %v346
    %v411 = vcvt.s32.f32 %v347
    %v412 = vcvt.s32.f32 %v348
    %v413 = vcvt.s32.f32 %v349
    %v414 = vcvt.s32.f32 %v350
    %v415 = vcvt.s32.f32 %v351
    %v416 = vcvt.s32.f32 %v352
    %v417 = vcvt.s32.f32 %v353
    %v418 = vcvt.s32.f32 %v354
    %v419 = vcvt.s32.f32 %v355
    %v420 = vcvt.s32.f32 %v356
    %v421 = vcvt.s32.f32 %v357
    %v422 = vcvt.s32.f32 %v358
    %v423 = vcvt.s32.f32 %v359
    %v424 = vcvt.s32.f32 %v360
    %v425 = vcvt.s32.f32 %v361
    %v426 = vcvt.s32.f32 %v362
    %v427 = vcvt.s32.f32 %v363
    %v428 = vcvt.s32.f32 %v364
    %v429 = vcvt.s32.f32 %v365
    %v430 = vcvt.s32.f32 %v366
    %v431 = vcvt.s32.f32 %v367
    %v432 = vcvt.s32.f32 %v368
    %v433 = vcvt.s32.f32 %v369
    %v434 = vcvt.s32.f32 %v370
    %v435 = vcvt.s32.f32 %v371
    %v436 = vcvt.s32.f32 %v372
    %v437 = vcvt.s32.f32 %v373
    %v438 = vcvt.s32.f32 %v374
    %v439 = vcvt.s32.f32 %v375
    %v440 = vcvt.s32.f32 %v376
    %v441 = vcvt.s32.f32 %v377
    %v442 = vcvt.s32.f32 %v378
    %v443 = vcvt.s32.f32 %v379
    %v444 = vcvt.s32.f32 %v380
    %v445 = vcvt.s32.f32 %v381
    %v446 = vcvt.s32.f32 %v382
    %v447 = vcvt.s32.f32 %v383
    %v448 = vcvt.s32.f32 %v384
    %v449 = vcvt.s32.f32 %v385
    %v450 = vcvt.s32.f32 %v386
    %v451 = vcvt.s32.f32 %v387
    %v452 = vcvt.s32.f32 %v388
    %v453 = vcvt.s32.f32 %v389
    %v454 = vcvt.s32.f32 %v390
    %v455 = vcvt.s32.f32 %v391
    %v456 = vcvt.s32.f32 %v392
    %v457 = vcvt.s32.f32 %v393
    %v458 = vcvt.s32.f32 %v394
    %v459 = vcvt.s32.f32 %v395
    %v460 = vcvt.s32.f32 %v396
    %v461 = vcvt.s32.f32 %v397
    %v462 = vcvt.s32.f32 %v398
    %v463 = vld [vmem:[%s1] sm:$0xff]
    %v464 = vld [vmem:[%s1 + $0x8] sm:$0xff]
    %v465 = vld [vmem:[%s1 + $0x10] sm:$0xff]
    %v466 = vld [vmem:[%s1 + $0x18] sm:$0xff]
    %v467 = vld [vmem:[%s1 + $0x20] sm:$0xff]
    %v468 = vld [vmem:[%s1 + $0x28] sm:$0xff]
    %v469 = vld [vmem:[%s1 + $0x30] sm:$0xff]
    %v470 = vld [vmem:[%s1 + $0x38] sm:$0xff]
    %v471 = vld [vmem:[%s1 + $0x40] sm:$0xff]
    %v472 = vld [vmem:[%s1 + $0x48] sm:$0xff]
    %v473 = vld [vmem:[%s1 + $0x50] sm:$0xff]
    %v474 = vld [vmem:[%s1 + $0x58] sm:$0xff]
    %v475 = vld [vmem:[%s1 + $0x60] sm:$0xff]
    %v476 = vld [vmem:[%s1 + $0x68] sm:$0xff]
    %v477 = vld [vmem:[%s1 + $0x70] sm:$0xff]
    %v478 = vld [vmem:[%s1 + $0x78] sm:$0xff]
    %v479 = vld [vmem:[%s1 + $0x80] sm:$0xff]
    %v480 = vld [vmem:[%s1 + $0x88] sm:$0xff]
    %v481 = vld [vmem:[%s1 + $0x90] sm:$0xff]
    %v482 = vld [vmem:[%s1 + $0x98] sm:$0xff]
    %v483 = vld [vmem:[%s1 + $0xa0] sm:$0xff]
    %v484 = vld [vmem:[%s1 + $0xa8] sm:$0xff]
    %v485 = vld [vmem:[%s1 + $0xb0] sm:$0xff]
    %v486 = vld [vmem:[%s1 + $0xb8] sm:$0xff]
    %v487 = vld [vmem:[%s1 + $0xc0] sm:$0xff]
    %v488 = vld [vmem:[%s1 + $0xc8] sm:$0xff]
    %v489 = vld [vmem:[%s1 + $0xd0] sm:$0xff]
    %v490 = vld [vmem:[%s1 + $0xd8] sm:$0xff]
    %v491 = vld [vmem:[%s1 + $0xe0] sm:$0xff]
    %v492 = vld [vmem:[%s1 + $0xe8] sm:$0xff]
    %v493 = vld [vmem:[%s1 + $0xf0] sm:$0xff]
    %v494 = vld [vmem:[%s1 + $0xf8] sm:$0xff]
    %495 = vmatprep.subr.mxu0 0.0
    %496 = vmatpush1.msra.mxu0 %v463
    %497 = vmatprep.subr.mxu0 0.0
    %498 = vmatpush1.msra.mxu0 %v464
    %499 = vmatprep.subr.mxu0 0.0
    %500 = vmatpush1.msra.mxu0 %v465
    %501 = vmatprep.subr.mxu0 0.0
    %502 = vmatpush1.msra.mxu0 %v466
    %503 = vmatprep.subr.mxu0 0.0
    %504 = vmatpush1.msra.mxu0 %v467
    %505 = vmatprep.subr.mxu0 0.0
    %506 = vmatpush1.msra.mxu0 %v468
    %507 = vmatprep.subr.mxu0 0.0
    %508 = vmatpush1.msra.mxu0 %v469
    %509 = vmatprep.subr.mxu0 0.0
    %510 = vmatpush1.msra.mxu0 %v470
    %511 = vmatprep.subr.mxu0 0.0
    %512 = vmatpush1.msra.mxu0 %v471
    %513 = vmatprep.subr.mxu0 0.0
    %514 = vmatpush1.msra.mxu0 %v472
    %515 = vmatprep.subr.mxu0 0.0
    %516 = vmatpush1.msra.mxu0 %v473
    %517 = vmatprep.subr.mxu0 0.0
    %518 = vmatpush1.msra.mxu0 %v474
    %519 = vmatprep.subr.mxu0 0.0
    %520 = vmatpush1.msra.mxu0 %v475
    %521 = vmatprep.subr.mxu0 0.0
    %522 = vmatpush1.msra.mxu0 %v476
    %523 = vmatprep.subr.mxu0 0.0
    %524 = vmatpush1.msra.mxu0 %v477
    %525 = vmatprep.subr.mxu0 0.0
    %526 = vmatpush1.msra.mxu0 %v478
    %527 = vmatprep.subr.mxu0 0.0
    %528 = vmatpush1.msra.mxu0 %v479
    %529 = vmatprep.subr.mxu0 0.0
    %530 = vmatpush1.msra.mxu0 %v480
    %531 = vmatprep.subr.mxu0 0.0
    %532 = vmatpush1.msra.mxu0 %v481
    %533 = vmatprep.subr.mxu0 0.0
    %534 = vmatpush1.msra.mxu0 %v482
    %535 = vmatprep.subr.mxu0 0.0
    %536 = vmatpush1.msra.mxu0 %v483
    %537 = vmatprep.subr.mxu0 0.0
    %538 = vmatpush1.msra.mxu0 %v484
    %539 = vmatprep.subr.mxu0 0.0
    %540 = vmatpush1.msra.mxu0 %v485
    %541 = vmatprep.subr.mxu0 0.0
    %542 = vmatpush1.msra.mxu0 %v486
    %543 = vmatprep.subr.mxu0 0.0
    %544 = vmatpush1.msra.mxu0 %v487
    %545 = vmatprep.subr.mxu0 0.0
    %546 = vmatpush1.msra.mxu0 %v488
    %547 = vmatprep.subr.mxu0 0.0
    %548 = vmatpush1.msra.mxu0 %v489
    %549 = vmatprep.subr.mxu0 0.0
    %550 = vmatpush1.msra.mxu0 %v490
    %551 = vmatprep.subr.mxu0 0.0
    %552 = vmatpush1.msra.mxu0 %v491
    %553 = vmatprep.subr.mxu0 0.0
    %554 = vmatpush1.msra.mxu0 %v492
    %555 = vmatprep.subr.mxu0 0.0
    %556 = vmatpush1.msra.mxu0 %v493
    %557 = vmatprep.subr.mxu0 0.0
    %558 = vmatpush1.msra.mxu0 %v494
    %559 = vmatprep.mubr.f32.mxu0 %v400
    %560 = vmatmul.mubr.f32.gmra.mrb[0].mxu0 %v399
    %v561 = vpop.f32.mrb[0].mxu0
    %v562 = vadd.f32 0.0, %v561
    %v563 = vpop.f32.mrb[0].mxu0
    %564 = vmatprep.mubr.f32.mxu0 %v402
    %565 = vmatmul.mubr.f32.gmra.mrb[0].mxu0 %v401
    %v566 = vpop.f32.mrb[0].mxu0
    %v567 = vadd.f32 0.0, %v566
    %v568 = vpop.f32.mrb[0].mxu0
    %569 = vmatprep.mubr.f32.mxu0 %v404
    %570 = vmatmul.mubr.f32.gmra.mrb[0].mxu0 %v403
    %v571 = vpop.f32.mrb[0].mxu0
    %v572 = vadd.f32 0.0, %v571
    %v573 = vpop.f32.mrb[0].mxu0
    %574 = vmatprep.mubr.f32.mxu0 %v406
    %575 = vmatmul.mubr.f32.gmra.mrb[0].mxu0 %v405
    %v576 = vpop.f32.mrb[0].mxu0
    %v577 = vadd.f32 0.0, %v576
    %v578 = vpop.f32.mrb[0].mxu0
    %579 = vmatprep.mubr.f32.mxu0 %v408
    %580 = vmatmul.mubr.f32.gmra.mrb[0].mxu0 %v407
    %v581 = vpop.f32.mrb[0].mxu0
    %v582 = vadd.f32 0.0, %v581
    %v583 = vpop.f32.mrb[0].mxu0
    %584 = vmatprep.mubr.f32.mxu0 %v410
    %585 = vmatmul.mubr.f32.gmra.mrb[0].mxu0 %v409
    %v586 = vpop.f32.mrb[0].mxu0
    %v587 = vadd.f32 0.0, %v586
    %v588 = vpop.f32.mrb[0].mxu0
    %589 = vmatprep.mubr.f32.mxu0 %v412
    %590 = vmatmul.mubr.f32.gmra.mrb[0].mxu0 %v411
    %v591 = vpop.f32.mrb[0].mxu0
    %v592 = vadd.f32 0.0, %v591
    %v593 = vpop.f32.mrb[0].mxu0
    %594 = vmatprep.mubr.f32.mxu0 %v414
    %595 = vmatmul.mubr.f32.gmra.mrb[0].mxu0 %v413
    %v596 = vpop.f32.mrb[0].mxu0
    %v597 = vadd.f32 0.0, %v596
    %v598 = vpop.f32.mrb[0].mxu0
    %599 = vmatprep.mubr.f32.mxu0 %v416
    %600 = vmatmul.mubr.f32.gmra.mrb[0].mxu0 %v415
    %v601 = vpop.f32.mrb[0].mxu0
    %v602 = vadd.f32 0.0, %v601
    %v603 = vpop.f32.mrb[0].mxu0
    %604 = vmatprep.mubr.f32.mxu0 %v418
    %605 = vmatmul.mubr.f32.gmra.mrb[0].mxu0 %v417
    %v606 = vpop.f32.mrb[0].mxu0
    %v607 = vadd.f32 0.0, %v606
    %v608 = vpop.f32.mrb[0].mxu0
    %609 = vmatprep.mubr.f32.mxu0 %v420
    %610 = vmatmul.mubr.f32.gmra.mrb[0].mxu0 %v419
    %v611 = vpop.f32.mrb[0].mxu0
    %v612 = vadd.f32 0.0, %v611
    %v613 = vpop.f32.mrb[0].mxu0
    %614 = vmatprep.mubr.f32.mxu0 %v422
    %615 = vmatmul.mubr.f32.gmra.mrb[0].mxu0 %v421
    %v616 = vpop.f32.mrb[0].mxu0
    %v617 = vadd.f32 0.0, %v616
    %v618 = vpop.f32.mrb[0].mxu0
    %619 = vmatprep.mubr.f32.mxu0 %v424
    %620 = vmatmul.mubr.f32.gmra.mrb[0].mxu0 %v423
    %v621 = vpop.f32.mrb[0].mxu0
    %v622 = vadd.f32 0.0, %v621
    %v623 = vpop.f32.mrb[0].mxu0
    %624 = vmatprep.mubr.f32.mxu0 %v426
    %625 = vmatmul.mubr.f32.gmra.mrb[0].mxu0 %v425
    %v626 = vpop.f32.mrb[0].mxu0
    %v627 = vadd.f32 0.0, %v626
    %v628 = vpop.f32.mrb[0].mxu0
    %629 = vmatprep.mubr.f32.mxu0 %v428
    %630 = vmatmul.mubr.f32.gmra.mrb[0].mxu0 %v427
    %v631 = vpop.f32.mrb[0].mxu0
    %v632 = vadd.f32 0.0, %v631
    %v633 = vpop.f32.mrb[0].mxu0
    %634 = vmatprep.mubr.f32.mxu0 %v430
    %635 = vmatmul.mubr.f32.gmra.mrb[0].mxu0 %v429
    %v636 = vpop.f32.mrb[0].mxu0
    %v637 = vadd.f32 0.0, %v636
    %v638 = vpop.f32.mrb[0].mxu0
    %639 = vmatprep.mubr.f32.mxu0 %v432
    %640 = vmatmul.mubr.f32.gmra.mrb[0].mxu0 %v431
    %v641 = vpop.f32.mrb[0].mxu0
    %v642 = vadd.f32 0.0, %v641
    %v643 = vpop.f32.mrb[0].mxu0
    %644 = vmatprep.mubr.f32.mxu0 %v434
    %645 = vmatmul.mubr.f32.gmra.mrb[0].mxu0 %v433
    %v646 = vpop.f32.mrb[0].mxu0
    %v647 = vadd.f32 0.0, %v646
    %v648 = vpop.f32.mrb[0].mxu0
    %649 = vmatprep.mubr.f32.mxu0 %v436
    %650 = vmatmul.mubr.f32.gmra.mrb[0].mxu0 %v435
    %v651 = vpop.f32.mrb[0].mxu0
    %v652 = vadd.f32 0.0, %v651
    %v653 = vpop.f32.mrb[0].mxu0
    %654 = vmatprep.mubr.f32.mxu0 %v438
    %655 = vmatmul.mubr.f32.gmra.mrb[0].mxu0 %v437
    %v656 = vpop.f32.mrb[0].mxu0
    %v657 = vadd.f32 0.0, %v656
    %v658 = vpop.f32.mrb[0].mxu0
    %659 = vmatprep.mubr.f32.mxu0 %v440
    %660 = vmatmul.mubr.f32.gmra.mrb[0].mxu0 %v439
    %v661 = vpop.f32.mrb[0].mxu0
    %v662 = vadd.f32 0.0, %v661
    %v663 = vpop.f32.mrb[0].mxu0
    %664 = vmatprep.mubr.f32.mxu0 %v442
    %665 = vmatmul.mubr.f32.gmra.mrb[0].mxu0 %v441
    %v666 = vpop.f32.mrb[0].mxu0
    %v667 = vadd.f32 0.0, %v666
    %v668 = vpop.f32.mrb[0].mxu0
    %669 = vmatprep.mubr.f32.mxu0 %v444
    %670 = vmatmul.mubr.f32.gmra.mrb[0].mxu0 %v443
    %v671 = vpop.f32.mrb[0].mxu0
    %v672 = vadd.f32 0.0, %v671
    %v673 = vpop.f32.mrb[0].mxu0
    %674 = vmatprep.mubr.f32.mxu0 %v446
    %675 = vmatmul.mubr.f32.gmra.mrb[0].mxu0 %v445
    %v676 = vpop.f32.mrb[0].mxu0
    %v677 = vadd.f32 0.0, %v676
    %v678 = vpop.f32.mrb[0].mxu0
    %679 = vmatprep.mubr.f32.mxu0 %v448
    %680 = vmatmul.mubr.f32.gmra.mrb[0].mxu0 %v447
    %v681 = vpop.f32.mrb[0].mxu0
    %v682 = vadd.f32 0.0, %v681
    %v683 = vpop.f32.mrb[0].mxu0
    %684 = vmatprep.mubr.f32.mxu0 %v450
    %685 = vmatmul.mubr.f32.gmra.mrb[0].mxu0 %v449
    %v686 = vpop.f32.mrb[0].mxu0
    %v687 = vadd.f32 0.0, %v686
    %v688 = vpop.f32.mrb[0].mxu0
    %689 = vmatprep.mubr.f32.mxu0 %v452
    %690 = vmatmul.mubr.f32.gmra.mrb[0].mxu0 %v451
    %v691 = vpop.f32.mrb[0].mxu0
    %v692 = vadd.f32 0.0, %v691
    %v693 = vpop.f32.mrb[0].mxu0
    %694 = vmatprep.mubr.f32.mxu0 %v454
    %695 = vmatmul.mubr.f32.gmra.mrb[0].mxu0 %v453
    %v696 = vpop.f32.mrb[0].mxu0
    %v697 = vadd.f32 0.0, %v696
    %v698 = vpop.f32.mrb[0].mxu0
    %699 = vmatprep.mubr.f32.mxu0 %v456
    %700 = vmatmul.mubr.f32.gmra.mrb[0].mxu0 %v455
    %v701 = vpop.f32.mrb[0].mxu0
    %v702 = vadd.f32 0.0, %v701
    %v703 = vpop.f32.mrb[0].mxu0
    %704 = vmatprep.mubr.f32.mxu0 %v458
    %705 = vmatmul.mubr.f32.gmra.mrb[0].mxu0 %v457
    %v706 = vpop.f32.mrb[0].mxu0
    %v707 = vadd.f32 0.0, %v706
    %v708 = vpop.f32.mrb[0].mxu0
    %709 = vmatprep.mubr.f32.mxu0 %v460
    %710 = vmatmul.mubr.f32.gmra.mrb[0].mxu0 %v459
    %v711 = vpop.f32.mrb[0].mxu0
    %v712 = vadd.f32 0.0, %v711
    %v713 = vpop.f32.mrb[0].mxu0
    %714 = vmatprep.mubr.f32.mxu0 %v462
    %715 = vmatmul.mubr.f32.gmra.mrb[0].mxu0 %v461
    %v716 = vpop.f32.mrb[0].mxu0
    %v717 = vadd.f32 0.0, %v716
    %v718 = vpop.f32.mrb[0].mxu0
    %719 = vdwg.mxu0
    %720 = vst [vmem:[#allocation2] sm:$0xff] %v562
    %721 = vst [vmem:[#allocation2 + $0x8] sm:$0xff] %v567
    %722 = vst [vmem:[#allocation2 + $0x10] sm:$0xff] %v572
    %723 = vst [vmem:[#allocation2 + $0x18] sm:$0xff] %v577
    %724 = vst [vmem:[#allocation2 + $0x20] sm:$0xff] %v582
    %725 = vst [vmem:[#allocation2 + $0x28] sm:$0xff] %v587
    %726 = vst [vmem:[#allocation2 + $0x30] sm:$0xff] %v592
    %727 = vst [vmem:[#allocation2 + $0x38] sm:$0xff] %v597
    %728 = vst [vmem:[#allocation2 + $0x40] sm:$0xff] %v602
    %729 = vst [vmem:[#allocation2 + $0x48] sm:$0xff] %v607
    %730 = vst [vmem:[#allocation2 + $0x50] sm:$0xff] %v612
    %731 = vst [vmem:[#allocation2 + $0x58] sm:$0xff] %v617
    %732 = vst [vmem:[#allocation2 + $0x60] sm:$0xff] %v622
    %733 = vst [vmem:[#allocation2 + $0x68] sm:$0xff] %v627
    %734 = vst [vmem:[#allocation2 + $0x70] sm:$0xff] %v632
    %735 = vst [vmem:[#allocation2 + $0x78] sm:$0xff] %v637
    %736 = vst [vmem:[#allocation2 + $0x80] sm:$0xff] %v642
    %737 = vst [vmem:[#allocation2 + $0x88] sm:$0xff] %v647
    %738 = vst [vmem:[#allocation2 + $0x90] sm:$0xff] %v652
    %739 = vst [vmem:[#allocation2 + $0x98] sm:$0xff] %v657
    %740 = vst [vmem:[#allocation2 + $0xa0] sm:$0xff] %v662
    %741 = vst [vmem:[#allocation2 + $0xa8] sm:$0xff] %v667
    %742 = vst [vmem:[#allocation2 + $0xb0] sm:$0xff] %v672
    %743 = vst [vmem:[#allocation2 + $0xb8] sm:$0xff] %v677
    %744 = vst [vmem:[#allocation2 + $0xc0] sm:$0xff] %v682
    %745 = vst [vmem:[#allocation2 + $0xc8] sm:$0xff] %v687
    %746 = vst [vmem:[#allocation2 + $0xd0] sm:$0xff] %v692
    %747 = vst [vmem:[#allocation2 + $0xd8] sm:$0xff] %v697
    %748 = vst [vmem:[#allocation2 + $0xe0] sm:$0xff] %v702
    %749 = vst [vmem:[#allocation2 + $0xe8] sm:$0xff] %v707
    %750 = vst [vmem:[#allocation2 + $0xf0] sm:$0xff] %v712
    %751 = vst [vmem:[#allocation2 + $0xf8] sm:$0xff] %v717
    // Predicated region
    $region10: #{tpu_custom_call.1} parent=1 // pred_check
      _
    $region11: #{tpu_custom_call.1} parent=1 // pred_check_branch
      %753 = sbr.rel (0) target = $region13
    $region12: #{tpu_custom_call.1} parent=1 // pred_region
      %s755 = ssub.s32 4096, 4096
      %756 = vsyncadd [#allocation3], %s755
      %s757 = sshll.u32 [#allocation2], 4
      %s758 = int_to_ptr.vmem [resolvable:$true] %s757
      %763 = dma.vmem_to_hbm [thread:$0]  %s758, 4096, %s2, [#allocation3], 128, 128, 8
    $region13: #{tpu_custom_call.1} parent=1 // pred_fallthru
      _
    // Predicated region
    $region14: #{tpu_custom_call.1} parent=1 // pred_check
      _
    $region15: #{tpu_custom_call.1} parent=1 // pred_check_branch
      %765 = sbr.rel (0) target = $region17
    $region16: #{tpu_custom_call.1} parent=1 // pred_region
      %766 = dma.done [#allocation3], 4096
    $region17: #{tpu_custom_call.1} parent=1 // pred_fallthru
      _
    %767 = vsyncpa [#allocation3], 1

</llo_original>
